<compile_context>
chip_gen: v5e
topology: v5e:2x2
jax: 0.10.0
libtpu: 0.0.40
codegen_flags: <defaults>
</compile_context>

<pallas_src>
import jax
import jax.numpy as jnp
from jax import lax
from jax.experimental import pallas as pl
from jax.experimental.pallas import tpu as pltpu


def _encoding_kernel(x_ref, cw_ref, scale_ref, out_ref):
    # x_ref:     (C, N)  one batch item (leading batch dim squeezed), N = H*W on lanes
    # cw_ref:    (K, C)  codewords
    # scale_ref: (K, 1)  per-codeword scale (column so it broadcasts over lanes)
    # out_ref:   (K, C)  encoded features for this batch item (PyTorch layout)
    x = x_ref[...].astype(jnp.float32)           # (C, N)
    cw = cw_ref[...].astype(jnp.float32)         # (K, C)
    scale = scale_ref[...].astype(jnp.float32)   # (K, 1)
    C = x.shape[0]

    # scaled L2 in exact diff form: sl2[k,n] = scale[k] * sum_c (x[c,n]-cw[k,c])^2
    # C is tiny (4): static VPU unroll (sublane-broadcast of x rows, lane-splat
    # of codeword columns) — no MXU push/pop for a length-4 contraction.
    sq = None
    for c in range(C):
        d = x[c:c + 1, :] - cw[:, c:c + 1]       # (K, N)
        sq = d * d if sq is None else sq + d * d
    sl2 = scale * sq                             # (K, N)

    # softmax over codes (axis 0, sublane reduction); exact normalization.
    m = jnp.max(sl2, axis=0, keepdims=True)      # (1, N)
    e = jnp.exp(sl2 - m)                         # (K, N)
    denom = jnp.sum(e, axis=0, keepdims=True)    # (1, N)
    a = e / denom                                # (K, N) assignment weights

    # enc[k,c] = sum_n a[k,n]*x[c,n] - (sum_n a[k,n]) * cw[k,c]
    # Single MXU matmul, contraction over N=256 lanes, output (K, C).
    ax = lax.dot_general(a, x, (((1,), (1,)), ((), ())),
                         preferred_element_type=jnp.float32)   # (K, C)
    a_sum = jnp.sum(a, axis=1, keepdims=True)    # (K, 1)
    out_ref[...] = (ax - a_sum * cw).astype(out_ref.dtype)


def encoding_forward(x_nchw, codewords, scale):
    """x_nchw: (B, C, H, W); codewords: (K, C); scale: (K,) -> (B, K, C)."""
    B, C, H, W = x_nchw.shape
    K, Cc = codewords.shape
    assert Cc == C
    N = H * W

    # Native layout: (B, C, N) is a free reshape of NCHW (no HBM transpose).
    x_bcn = x_nchw.reshape(B, C, N)
    cw32 = codewords.astype(jnp.float32)
    scale_col = scale.astype(jnp.float32).reshape(K, 1)   # (K, 1), tiny

    return pl.pallas_call(
        _encoding_kernel,
        out_shape=jax.ShapeDtypeStruct((B, K, C), x_nchw.dtype),
        grid_spec=pl.GridSpec(
            grid=(B,),  # one batch item per grid step; parallel -> both TCs on v7x
            in_specs=[
                pl.BlockSpec((None, C, N), lambda b: (b, 0, 0)),  # x, batch squeezed
                pl.BlockSpec((K, C), lambda b: (0, 0)),           # codewords
                pl.BlockSpec((K, 1), lambda b: (0, 0)),           # scale column
            ],
            out_specs=pl.BlockSpec((None, K, C), lambda b: (b, 0, 0)),
        ),
        compiler_params=pltpu.CompilerParams(
            dimension_semantics=("parallel",)),
    )(x_bcn, cw32, scale_col)


def encoding_reference(x_nchw, codewords, scale):
    """Pure-JAX reference matching the PyTorch module exactly."""
    B, C, H, W = x_nchw.shape
    x = jnp.transpose(x_nchw.reshape(B, C, H * W), (0, 2, 1))   # (B, N, C)
    diff = x[:, :, None, :] - codewords[None, None, :, :]        # (B, N, K, C)
    sl2 = scale[None, None, :] * jnp.sum(diff * diff, axis=3)    # (B, N, K)
    A = jax.nn.softmax(sl2, axis=2)                              # (B, N, K)
    enc = jnp.sum(A[:, :, :, None] * diff, axis=1)               # (B, K, C)
    return enc


if __name__ == "__main__":
    # Module config: in_channels=4; PyTorch __init__ hard-codes num_codes=64
    # for the parameter shapes.
    in_channels = 4
    num_codes = 64
    B, H, W = 2, 16, 16

    key = jax.random.PRNGKey(0)
    kx, kcw, ksc = jax.random.split(key, 3)

    x = jax.random.normal(kx, (B, in_channels, H, W), dtype=jnp.float32)

    std = 1.0 / (num_codes * in_channels) ** 0.5
    codewords = jax.random.uniform(
        kcw, (num_codes, in_channels), dtype=jnp.float32, minval=-std, maxval=std)
    scale = jax.random.uniform(
        ksc, (num_codes,), dtype=jnp.float32, minval=-1.0, maxval=0.0)

    fwd = jax.jit(encoding_forward)
    out = jax.block_until_ready(fwd(x, codewords, scale))

    ref = encoding_reference(x, codewords, scale)
    assert out.shape == (B, num_codes, in_channels)
    assert jnp.allclose(out, ref, rtol=1e-3, atol=1e-4), "mismatch vs reference"

    print("KERNEL_OK")
</pallas_src>

<mosaic_0001>
module attributes {stable_mosaic.version = 11 : i64} {
  func.func @_encoding_kernel(%arg0: i32, %arg1: memref<1x4x256xf32, #tpu.memory_space<vmem>>, %arg2: memref<64x4xf32, #tpu.memory_space<vmem>>, %arg3: memref<64x1xf32, #tpu.memory_space<vmem>>, %arg4: memref<1x64x4xf32, #tpu.memory_space<vmem>>) attributes {dimension_semantics = [#tpu.dimension_semantics<parallel>], iteration_bounds = array<i64: 2>, scalar_prefetch = 0 : i64, scratch_operands = 0 : i64, tpu.core_type = #tpu.core_type<tc>, window_params = [{transform_indices = @transform_0, window_bounds = array<i64: 1, 4, 256>}, {pipeline_mode = #tpu.pipeline_mode<synchronous>, transform_indices = @transform_1, window_bounds = array<i64: 64, 4>}, {pipeline_mode = #tpu.pipeline_mode<synchronous>, transform_indices = @transform_2, window_bounds = array<i64: 64, 1>}, {transform_indices = @transform_3, window_bounds = array<i64: 1, 64, 4>}]} {
    %c0 = arith.constant 0 : index
    %c0_0 = arith.constant 0 : index
    %c0_1 = arith.constant 0 : index
    %0 = vector.load %arg1[%c0, %c0_0, %c0_1] : memref<1x4x256xf32, #tpu.memory_space<vmem>>, vector<1x4x256xf32>
    %1 = vector.shape_cast %0 : vector<1x4x256xf32> to vector<4x256xf32>
    %c0_2 = arith.constant 0 : index
    %c0_3 = arith.constant 0 : index
    %2 = vector.load %arg2[%c0_2, %c0_3] : memref<64x4xf32, #tpu.memory_space<vmem>>, vector<64x4xf32>
    %c0_4 = arith.constant 0 : index
    %c0_5 = arith.constant 0 : index
    %3 = vector.load %arg3[%c0_4, %c0_5] : memref<64x1xf32, #tpu.memory_space<vmem>>, vector<64x1xf32>
    %4 = vector.extract_strided_slice %1 {offsets = [0, 0], sizes = [1, 256], strides = [1, 1]} : vector<4x256xf32> to vector<1x256xf32>
    %5 = vector.extract_strided_slice %2 {offsets = [0, 0], sizes = [64, 1], strides = [1, 1]} : vector<64x4xf32> to vector<64x1xf32>
    %6 = vector.broadcast %4 : vector<1x256xf32> to vector<64x256xf32>
    %7 = vector.broadcast %5 : vector<64x1xf32> to vector<64x256xf32>
    %8 = arith.subf %6, %7 : vector<64x256xf32>
    %9 = arith.mulf %8, %8 : vector<64x256xf32>
    %10 = vector.extract_strided_slice %1 {offsets = [1, 0], sizes = [1, 256], strides = [1, 1]} : vector<4x256xf32> to vector<1x256xf32>
    %11 = vector.extract_strided_slice %2 {offsets = [0, 1], sizes = [64, 1], strides = [1, 1]} : vector<64x4xf32> to vector<64x1xf32>
    %12 = vector.broadcast %10 : vector<1x256xf32> to vector<64x256xf32>
    %13 = vector.broadcast %11 : vector<64x1xf32> to vector<64x256xf32>
    %14 = arith.subf %12, %13 : vector<64x256xf32>
    %15 = arith.mulf %14, %14 : vector<64x256xf32>
    %16 = arith.addf %9, %15 : vector<64x256xf32>
    %17 = vector.extract_strided_slice %1 {offsets = [2, 0], sizes = [1, 256], strides = [1, 1]} : vector<4x256xf32> to vector<1x256xf32>
    %18 = vector.extract_strided_slice %2 {offsets = [0, 2], sizes = [64, 1], strides = [1, 1]} : vector<64x4xf32> to vector<64x1xf32>
    %19 = vector.broadcast %17 : vector<1x256xf32> to vector<64x256xf32>
    %20 = vector.broadcast %18 : vector<64x1xf32> to vector<64x256xf32>
    %21 = arith.subf %19, %20 : vector<64x256xf32>
    %22 = arith.mulf %21, %21 : vector<64x256xf32>
    %23 = arith.addf %16, %22 : vector<64x256xf32>
    %24 = vector.extract_strided_slice %1 {offsets = [3, 0], sizes = [1, 256], strides = [1, 1]} : vector<4x256xf32> to vector<1x256xf32>
    %25 = vector.extract_strided_slice %2 {offsets = [0, 3], sizes = [64, 1], strides = [1, 1]} : vector<64x4xf32> to vector<64x1xf32>
    %26 = vector.broadcast %24 : vector<1x256xf32> to vector<64x256xf32>
    %27 = vector.broadcast %25 : vector<64x1xf32> to vector<64x256xf32>
    %28 = arith.subf %26, %27 : vector<64x256xf32>
    %29 = arith.mulf %28, %28 : vector<64x256xf32>
    %30 = arith.addf %23, %29 : vector<64x256xf32>
    %31 = vector.broadcast %3 : vector<64x1xf32> to vector<64x256xf32>
    %32 = arith.mulf %31, %30 : vector<64x256xf32>
    %cst = arith.constant dense<0xFF800000> : vector<256xf32>
    %33 = vector.multi_reduction <maximumf>, %32, %cst [0] : vector<64x256xf32> to vector<256xf32>
    %34 = vector.shape_cast %33 : vector<256xf32> to vector<1x256xf32>
    %35 = vector.broadcast %34 : vector<1x256xf32> to vector<64x256xf32>
    %36 = arith.subf %32, %35 : vector<64x256xf32>
    %37 = math.exp %36 : vector<64x256xf32>
    %cst_6 = arith.constant dense<0.000000e+00> : vector<256xf32>
    %38 = vector.multi_reduction <add>, %37, %cst_6 [0] : vector<64x256xf32> to vector<256xf32>
    %39 = vector.shape_cast %38 : vector<256xf32> to vector<1x256xf32>
    %40 = vector.broadcast %39 : vector<1x256xf32> to vector<64x256xf32>
    %41 = arith.divf %37, %40 : vector<64x256xf32>
    %cst_7 = arith.constant dense<0.000000e+00> : vector<64x4xf32>
    %42 = tpu.matmul %41, %1, %cst_7 {dimension_numbers = #tpu.dot_dimension_numbers<[1], [1], [0], [0], [0, 0, 1, 0], [], []>} : vector<64x256xf32>, vector<4x256xf32>, vector<64x4xf32> -> vector<64x4xf32>
    %cst_8 = arith.constant dense<0.000000e+00> : vector<64xf32>
    %43 = vector.multi_reduction <add>, %41, %cst_8 [1] : vector<64x256xf32> to vector<64xf32>
    %44 = vector.shape_cast %43 : vector<64xf32> to vector<64x1xf32>
    %45 = vector.broadcast %44 : vector<64x1xf32> to vector<64x4xf32>
    %46 = arith.mulf %45, %2 : vector<64x4xf32>
    %47 = arith.subf %42, %46 : vector<64x4xf32>
    %c0_9 = arith.constant 0 : index
    %c0_10 = arith.constant 0 : index
    %c0_11 = arith.constant 0 : index
    %48 = vector.load %arg4[%c0_9, %c0_10, %c0_11] : memref<1x64x4xf32, #tpu.memory_space<vmem>>, vector<1x64x4xf32>
    %49 = vector.shape_cast %48 : vector<1x64x4xf32> to vector<64x4xf32>
    %50 = vector.shape_cast %47 : vector<64x4xf32> to vector<1x64x4xf32>
    tpu.vector_store %arg4[%c0_9, %c0_10, %c0_11], %50 {strides = array<i32>} : memref<1x64x4xf32, #tpu.memory_space<vmem>>, vector<1x64x4xf32>,
    return
  }
  func.func @transform_0(%arg0: i32) -> (i32, i32, i32) {
    %c0_i32 = arith.constant 0 : i32
    %c0_i32_0 = arith.constant 0 : i32
    %c0_i32_1 = arith.constant 0 : i32
    return %arg0, %c0_i32, %c0_i32_0 : i32, i32, i32
  }
  func.func @transform_1(%arg0: i32) -> (i32, i32) {
    %c0_i32 = arith.constant 0 : i32
    %c0_i32_0 = arith.constant 0 : i32
    %c0_i32_1 = arith.constant 0 : i32
    return %c0_i32, %c0_i32_0 : i32, i32
  }
  func.func @transform_2(%arg0: i32) -> (i32, i32) {
    %c0_i32 = arith.constant 0 : i32
    %c0_i32_0 = arith.constant 0 : i32
    %c0_i32_1 = arith.constant 0 : i32
    return %c0_i32, %c0_i32_0 : i32, i32
  }
  func.func @transform_3(%arg0: i32) -> (i32, i32, i32) {
    %c0_i32 = arith.constant 0 : i32
    %c0_i32_0 = arith.constant 0 : i32
    %c0_i32_1 = arith.constant 0 : i32
    return %arg0, %c0_i32, %c0_i32_0 : i32, i32, i32
  }
}

</mosaic_0001>

<llo_original>
// kernel: encoding_forward.1
$region0: #{encoding_forward.1}
  #allocation0 [shape = 'u32[]', space=smem, size = 0x4, offset = 0x4, fixed_abs, tag = 'smem constant byte address 0x4 - core index']
  #allocation1 [shape = 'u32[72,128]{1,0:T(1,128)}', space=vmem, size = 0x9000, scoped, tag = 'internal scratch']
  %s0 = inlined_call_operand.vmem [shape: f32[2,4,256], index: 0, kind: input, shape index: {}]
  %s1 = inlined_call_operand.vmem [shape: f32[64,4], index: 1, kind: input, shape index: {}]
  %s2 = inlined_call_operand.vmem [shape: f32[64,1], index: 2, kind: input, shape index: {}]
  %s3 = inlined_call_operand.vmem [shape: f32[2,64,4], index: 3, kind: output, shape index: {}]
  %s4 = sld [smem:[#allocation0]]
  $region45: #{encoding_forward.1} parent=0
    _
  %s6 = ssub.s32 1, %s4
  %s7 = scalar_select 0, %s6, %s4
  loop: start=0, step=1, limit=4
  $region2: #{encoding_forward.1} parent=0 // loop_pre_header
    _
  $region3: #{encoding_forward.1} parent=0 // loop_header
    %s9 = sphi 0, %s13
    %p10 = scmp.ge.s32.totalorder %s9, 4
    %s19 = sphi 0, %s21
    %s22 = sphi 0, %s19
    %s23 = sphi 0, %s22
    %s39 = sphi 0, %s23
    %s43 = sphi 0, %s43
    %s45 = sphi 0, %s43
    %s46 = sphi 0, %s45
    %s60 = sphi 0, %s46
    %s64 = sphi 0, %s64
    %s66 = sphi 0, %s64
    %s67 = sphi 0, %s66
    %s81 = sphi 0, %s67
    %s87 = sphi 0, %s89
    %s90 = sphi 0, %s87
    %s91 = sphi 0, %s90
    %s107 = sphi 0, %s91
  $region4: #{encoding_forward.1} parent=0 // loop_header_branch
    %12 = sbr.rel (%p10) target = $region8
  $region5: #{encoding_forward.1} parent=0 // loop_body
    %s14 = ssub.s32 %s9, 1
    %s15 = ssub.s32 %s9, 2
    %s16 = sadd.s32 %s9, 1
    %s17 = ssub.s32 %s9, %s16
    %p18 = scmp.eq.s32.totalorder %s17, 0
    %s20 = sadd.s32 %s19, 1
    %s21 = scalar_select %p18, %s19, %s20
    %p24 = pneg %p18
    %p25 = scmp.eq.s32.totalorder %s9, 1
    %p26 = por %p24, %p25
    %p27 = scmp.ne.s32.totalorder %s19, %s22
    %p28 = scmp.eq.s32.totalorder %s9, 0
    %p29 = por %p27, %p28
    %p30 = scmp.ne.s32.totalorder %s19, %s22
    %p31 = scmp.eq.s32.totalorder %s14, 1
    %p32 = por %p30, %p31
    %p33 = scmp.ne.s32.totalorder %s22, %s23
    %p34 = scmp.eq.s32.totalorder %s14, 0
    %p35 = por %p33, %p34
    %p36 = scmp.ne.s32.totalorder %s22, %s23
    %p37 = scmp.eq.s32.totalorder %s15, 1
    %p38 = por %p36, %p37
    %p40 = scmp.ne.s32.totalorder %s23, %s39
    %p41 = scmp.eq.s32.totalorder %s15, 0
    %p42 = por %p40, %p41
    %s44 = sadd.s32 %s43, 1
    %p47 = scmp.eq.s32.totalorder %s9, 1
    %p48 = scmp.ne.s32.totalorder %s43, %s45
    %p49 = scmp.eq.s32.totalorder %s9, 0
    %p50 = por %p48, %p49
    %p51 = scmp.ne.s32.totalorder %s43, %s45
    %p52 = scmp.eq.s32.totalorder %s14, 1
    %p53 = por %p51, %p52
    %p54 = scmp.ne.s32.totalorder %s45, %s46
    %p55 = scmp.eq.s32.totalorder %s14, 0
    %p56 = por %p54, %p55
    %p57 = scmp.ne.s32.totalorder %s45, %s46
    %p58 = scmp.eq.s32.totalorder %s15, 1
    %p59 = por %p57, %p58
    %p61 = scmp.ne.s32.totalorder %s46, %s60
    %p62 = scmp.eq.s32.totalorder %s15, 0
    %p63 = por %p61, %p62
    %s65 = sadd.s32 %s64, 1
    %p68 = scmp.eq.s32.totalorder %s9, 1
    %p69 = scmp.ne.s32.totalorder %s64, %s66
    %p70 = scmp.eq.s32.totalorder %s9, 0
    %p71 = por %p69, %p70
    %p72 = scmp.ne.s32.totalorder %s64, %s66
    %p73 = scmp.eq.s32.totalorder %s14, 1
    %p74 = por %p72, %p73
    %p75 = scmp.ne.s32.totalorder %s66, %s67
    %p76 = scmp.eq.s32.totalorder %s14, 0
    %p77 = por %p75, %p76
    %p78 = scmp.ne.s32.totalorder %s66, %s67
    %p79 = scmp.eq.s32.totalorder %s15, 1
    %p80 = por %p78, %p79
    %p82 = scmp.ne.s32.totalorder %s67, %s81
    %p83 = scmp.eq.s32.totalorder %s15, 0
    %p84 = por %p82, %p83
    %s85 = ssub.s32 %s9, %s16
    %p86 = scmp.eq.s32.totalorder %s85, 0
    %s88 = sadd.s32 %s87, 1
    %s89 = scalar_select %p86, %s87, %s88
    %p92 = pneg %p86
    %p93 = scmp.eq.s32.totalorder %s9, 1
    %p94 = por %p92, %p93
    %p95 = scmp.ne.s32.totalorder %s87, %s90
    %p96 = scmp.eq.s32.totalorder %s9, 0
    %p97 = por %p95, %p96
    %p98 = scmp.ne.s32.totalorder %s87, %s90
    %p99 = scmp.eq.s32.totalorder %s14, 1
    %p100 = por %p98, %p99
    %p101 = scmp.ne.s32.totalorder %s90, %s91
    %p102 = scmp.eq.s32.totalorder %s14, 0
    %p103 = por %p101, %p102
    %p104 = scmp.ne.s32.totalorder %s90, %s91
    %p105 = scmp.eq.s32.totalorder %s15, 1
    %p106 = por %p104, %p105
    %p108 = scmp.ne.s32.totalorder %s91, %s107
    %p109 = scmp.eq.s32.totalorder %s15, 0
    %p110 = por %p108, %p109
    %p111 = scmp.le.s32.totalorder 1, %s9
    %p112 = scmp.lt.s32.totalorder %s9, 3
    %p113 = pnand %p111, %p112
    %p114 = pneg %p113
    // Predicated region
    $region9: #{encoding_forward.1} parent=5 // pred_check
      _
    $region10: #{encoding_forward.1} parent=5 // pred_check_branch
      %116 = sbr.rel (%p113) target = $region12
    $region11: #{encoding_forward.1} parent=5 // pred_region
      %s117 = ssub.s32 %s9, 1
      // Predicated region
      $region13: #{encoding_forward.1} parent=11 // pred_check
        %p118 = pneg %p56
      $region14: #{encoding_forward.1} parent=11 // pred_check_branch
        %120 = sbr.rel (%p118) target = $region16
      $region15: #{encoding_forward.1} parent=11 // pred_region
        _
      $region16: #{encoding_forward.1} parent=11 // pred_fallthru
        _
      // Predicated region
      $region17: #{encoding_forward.1} parent=11 // pred_check
        %p121 = pneg %p77
      $region18: #{encoding_forward.1} parent=11 // pred_check_branch
        %123 = sbr.rel (%p121) target = $region20
      $region19: #{encoding_forward.1} parent=11 // pred_region
        _
      $region20: #{encoding_forward.1} parent=11 // pred_fallthru
        _
    $region12: #{encoding_forward.1} parent=5 // pred_fallthru
      _
    %p124 = scmp.lt.s32.totalorder %s9, 2
    // Predicated region
    $region21: #{encoding_forward.1} parent=5 // pred_check
      %p125 = pneg %p124
    $region22: #{encoding_forward.1} parent=5 // pred_check_branch
      %127 = sbr.rel (%p125) target = $region24
    $region23: #{encoding_forward.1} parent=5 // pred_region
      // Predicated region
      $region25: #{encoding_forward.1} parent=23 // pred_check
        %p128 = pneg %p29
      $region26: #{encoding_forward.1} parent=23 // pred_check_branch
        %130 = sbr.rel (%p128) target = $region28
      $region27: #{encoding_forward.1} parent=23 // pred_region
        %p131 = scmp.lt.s32.totalorder %s9, 1
        %s132 = scalar_select %p131, %s9, 1
        %s133 = smul.addr %s132, 2
        %s134 = smul.addr %s133, 4
        %s135 = scalar_lea.vmem %s0, %s134
      $region28: #{encoding_forward.1} parent=23 // pred_fallthru
        _
    $region24: #{encoding_forward.1} parent=5 // pred_fallthru
      _
    %p136 = scmp.le.s32.totalorder 1, %s9
    %p137 = scmp.lt.s32.totalorder %s9, 3
    %p138 = pnand %p136, %p137
    %p139 = pneg %p138
    // Predicated region
    $region29: #{encoding_forward.1} parent=5 // pred_check
      _
    $region30: #{encoding_forward.1} parent=5 // pred_check_branch
      %141 = sbr.rel (%p138) target = $region32
    $region31: #{encoding_forward.1} parent=5 // pred_region
      %s142 = ssub.s32 %s9, 1
      %p143 = scmp.lt.s32.totalorder %s14, 1
      %s144 = scalar_select %p143, %s14, 1
      %s145 = smul.addr %s144, 2
      %s146 = smul.addr %s145, 4
      %s147 = scalar_lea.vmem %s0, %s146
      %p148 = pneg %p35
      %p149 = pneg %p32
      %p150 = pneg %p56
      %p151 = pneg %p53
      %p152 = pneg %p77
      %p153 = pneg %p74
      %p154 = pneg %p103
      %p155 = pneg %p100
      %p156 = scmp.lt.s32.totalorder %s14, 1
      %s157 = scalar_select %p156, %s14, 1
      %s158 = smul.addr %s157, 8
      %s159 = smul.addr %s158, 8
      %s160 = scalar_lea.vmem %s3, %s159
      %p161 = scmp.lt.s32.totalorder %s14, 1
      %s162 = scalar_select %p161, %s14, 1
      %s163 = smul.addr %s162, 2
      %s164 = smul.addr %s163, 4
      %s165 = scalar_lea.vmem %s0, %s164
      %p166 = scmp.lt.s32.totalorder %s14, 1
      %s167 = scalar_select %p166, %s14, 1
      %s168 = smul.addr %s167, 8
      %s169 = smul.addr %s168, 8
      %s170 = scalar_lea.vmem %s3, %s169
      %v171 = vld [vmem:[%s165] sm:$0xff]
      %v172 = vld [vmem:[%s1] sm:$0xff]
      %v173 = vld [vmem:[%s1 + $0x8] sm:$0xff]
      %v174 = vld [vmem:[%s1 + $0x10] sm:$0xff]
      %v175 = vld [vmem:[%s1 + $0x18] sm:$0xff]
      %v176 = vld [vmem:[%s1 + $0x20] sm:$0xff]
      %v177 = vld [vmem:[%s1 + $0x28] sm:$0xff]
      %v178 = vld [vmem:[%s1 + $0x30] sm:$0xff]
      %v179 = vld [vmem:[%s1 + $0x38] sm:$0xff]
      %v180 = vld [vmem:[%s2] sm:$0xff]
      %v181 = vld [vmem:[%s2 + $0x8] sm:$0xff]
      %v182 = vld [vmem:[%s2 + $0x10] sm:$0xff]
      %v183 = vld [vmem:[%s2 + $0x18] sm:$0xff]
      %v184 = vld [vmem:[%s2 + $0x20] sm:$0xff]
      %v185 = vld [vmem:[%s2 + $0x28] sm:$0xff]
      %v186 = vld [vmem:[%s2 + $0x30] sm:$0xff]
      %v187 = vld [vmem:[%s2 + $0x38] sm:$0xff]
      %v189 = vperm.slane %v171, 0
      %v190 = vperm.slane %v171, 4
      %v193 = vperm.slane %v189, 0
      %v194 = vperm.slane %v190, 0
      %196 = vset.pattern.permute.xlu0 0
      %197 = vperm.xlu0 %196, %v172
      %v198 = vpop.permute.xlu0 %197
      %201 = vset.pattern.permute.xlu0 0
      %202 = vperm.xlu0 %201, %v173
      %v203 = vpop.permute.xlu0 %202
      %206 = vset.pattern.permute.xlu0 0
      %207 = vperm.xlu0 %206, %v174
      %v208 = vpop.permute.xlu0 %207
      %211 = vset.pattern.permute.xlu0 0
      %212 = vperm.xlu0 %211, %v175
      %v213 = vpop.permute.xlu0 %212
      %216 = vset.pattern.permute.xlu0 0
      %217 = vperm.xlu0 %216, %v176
      %v218 = vpop.permute.xlu0 %217
      %221 = vset.pattern.permute.xlu0 0
      %222 = vperm.xlu0 %221, %v177
      %v223 = vpop.permute.xlu0 %222
      %226 = vset.pattern.permute.xlu0 0
      %227 = vperm.xlu0 %226, %v178
      %v228 = vpop.permute.xlu0 %227
      %231 = vset.pattern.permute.xlu0 0
      %232 = vperm.xlu0 %231, %v179
      %v233 = vpop.permute.xlu0 %232
      %v235 = vsub.f32 %v193, %v198
      %v236 = vsub.f32 %v194, %v198
      %v237 = vsub.f32 %v193, %v203
      %v238 = vsub.f32 %v194, %v203
      %v239 = vsub.f32 %v193, %v208
      %v240 = vsub.f32 %v194, %v208
      %v241 = vsub.f32 %v193, %v213
      %v242 = vsub.f32 %v194, %v213
      %v243 = vsub.f32 %v193, %v218
      %v244 = vsub.f32 %v194, %v218
      %v245 = vsub.f32 %v193, %v223
      %v246 = vsub.f32 %v194, %v223
      %v247 = vsub.f32 %v193, %v228
      %v248 = vsub.f32 %v194, %v228
      %v249 = vsub.f32 %v193, %v233
      %v250 = vsub.f32 %v194, %v233
      %v251 = vmul.f32 %v235, %v235
      %v252 = vmul.f32 %v236, %v236
      %v253 = vmul.f32 %v237, %v237
      %v254 = vmul.f32 %v238, %v238
      %v255 = vmul.f32 %v239, %v239
      %v256 = vmul.f32 %v240, %v240
      %v257 = vmul.f32 %v241, %v241
      %v258 = vmul.f32 %v242, %v242
      %v259 = vmul.f32 %v243, %v243
      %v260 = vmul.f32 %v244, %v244
      %v261 = vmul.f32 %v245, %v245
      %v262 = vmul.f32 %v246, %v246
      %v263 = vmul.f32 %v247, %v247
      %v264 = vmul.f32 %v248, %v248
      %v265 = vmul.f32 %v249, %v249
      %v266 = vmul.f32 %v250, %v250
      %v267 = vperm.slane %v171, 1
      %v268 = vperm.slane %v171, 5
      %v271 = vperm.slane %v267, 1
      %v272 = vperm.slane %v268, 1
      %273 = vset.pattern.permute.xlu0 1
      %274 = vperm.xlu0 %273, %v172
      %v275 = vpop.permute.xlu0 %274
      %277 = vset.pattern.permute.xlu0 1
      %278 = vperm.xlu0 %277, %v173
      %v279 = vpop.permute.xlu0 %278
      %281 = vset.pattern.permute.xlu0 1
      %282 = vperm.xlu0 %281, %v174
      %v283 = vpop.permute.xlu0 %282
      %285 = vset.pattern.permute.xlu0 1
      %286 = vperm.xlu0 %285, %v175
      %v287 = vpop.permute.xlu0 %286
      %289 = vset.pattern.permute.xlu0 1
      %290 = vperm.xlu0 %289, %v176
      %v291 = vpop.permute.xlu0 %290
      %293 = vset.pattern.permute.xlu0 1
      %294 = vperm.xlu0 %293, %v177
      %v295 = vpop.permute.xlu0 %294
      %297 = vset.pattern.permute.xlu0 1
      %298 = vperm.xlu0 %297, %v178
      %v299 = vpop.permute.xlu0 %298
      %301 = vset.pattern.permute.xlu0 1
      %302 = vperm.xlu0 %301, %v179
      %v303 = vpop.permute.xlu0 %302
      %v305 = vsub.f32 %v271, %v275
      %v306 = vsub.f32 %v272, %v275
      %v307 = vsub.f32 %v271, %v279
      %v308 = vsub.f32 %v272, %v279
      %v309 = vsub.f32 %v271, %v283
      %v310 = vsub.f32 %v272, %v283
      %v311 = vsub.f32 %v271, %v287
      %v312 = vsub.f32 %v272, %v287
      %v313 = vsub.f32 %v271, %v291
      %v314 = vsub.f32 %v272, %v291
      %v315 = vsub.f32 %v271, %v295
      %v316 = vsub.f32 %v272, %v295
      %v317 = vsub.f32 %v271, %v299
      %v318 = vsub.f32 %v272, %v299
      %v319 = vsub.f32 %v271, %v303
      %v320 = vsub.f32 %v272, %v303
      %v321 = vmul.f32 %v305, %v305
      %v322 = vmul.f32 %v306, %v306
      %v323 = vmul.f32 %v307, %v307
      %v324 = vmul.f32 %v308, %v308
      %v325 = vmul.f32 %v309, %v309
      %v326 = vmul.f32 %v310, %v310
      %v327 = vmul.f32 %v311, %v311
      %v328 = vmul.f32 %v312, %v312
      %v329 = vmul.f32 %v313, %v313
      %v330 = vmul.f32 %v314, %v314
      %v331 = vmul.f32 %v315, %v315
      %v332 = vmul.f32 %v316, %v316
      %v333 = vmul.f32 %v317, %v317
      %v334 = vmul.f32 %v318, %v318
      %v335 = vmul.f32 %v319, %v319
      %v336 = vmul.f32 %v320, %v320
      %v337 = vadd.f32 %v251, %v321
      %v338 = vadd.f32 %v252, %v322
      %v339 = vadd.f32 %v253, %v323
      %v340 = vadd.f32 %v254, %v324
      %v341 = vadd.f32 %v255, %v325
      %v342 = vadd.f32 %v256, %v326
      %v343 = vadd.f32 %v257, %v327
      %v344 = vadd.f32 %v258, %v328
      %v345 = vadd.f32 %v259, %v329
      %v346 = vadd.f32 %v260, %v330
      %v347 = vadd.f32 %v261, %v331
      %v348 = vadd.f32 %v262, %v332
      %v349 = vadd.f32 %v263, %v333
      %v350 = vadd.f32 %v264, %v334
      %v351 = vadd.f32 %v265, %v335
      %v352 = vadd.f32 %v266, %v336
      %v353 = vperm.slane %v171, 2
      %v354 = vperm.slane %v171, 6
      %v357 = vperm.slane %v353, 2
      %v358 = vperm.slane %v354, 2
      %359 = vset.pattern.permute.xlu0 2
      %360 = vperm.xlu0 %359, %v172
      %v361 = vpop.permute.xlu0 %360
      %363 = vset.pattern.permute.xlu0 2
      %364 = vperm.xlu0 %363, %v173
      %v365 = vpop.permute.xlu0 %364
      %367 = vset.pattern.permute.xlu0 2
      %368 = vperm.xlu0 %367, %v174
      %v369 = vpop.permute.xlu0 %368
      %371 = vset.pattern.permute.xlu0 2
      %372 = vperm.xlu0 %371, %v175
      %v373 = vpop.permute.xlu0 %372
      %375 = vset.pattern.permute.xlu0 2
      %376 = vperm.xlu0 %375, %v176
      %v377 = vpop.permute.xlu0 %376
      %379 = vset.pattern.permute.xlu0 2
      %380 = vperm.xlu0 %379, %v177
      %v381 = vpop.permute.xlu0 %380
      %383 = vset.pattern.permute.xlu0 2
      %384 = vperm.xlu0 %383, %v178
      %v385 = vpop.permute.xlu0 %384
      %387 = vset.pattern.permute.xlu0 2
      %388 = vperm.xlu0 %387, %v179
      %v389 = vpop.permute.xlu0 %388
      %v391 = vsub.f32 %v357, %v361
      %v392 = vsub.f32 %v358, %v361
      %v393 = vsub.f32 %v357, %v365
      %v394 = vsub.f32 %v358, %v365
      %v395 = vsub.f32 %v357, %v369
      %v396 = vsub.f32 %v358, %v369
      %v397 = vsub.f32 %v357, %v373
      %v398 = vsub.f32 %v358, %v373
      %v399 = vsub.f32 %v357, %v377
      %v400 = vsub.f32 %v358, %v377
      %v401 = vsub.f32 %v357, %v381
      %v402 = vsub.f32 %v358, %v381
      %v403 = vsub.f32 %v357, %v385
      %v404 = vsub.f32 %v358, %v385
      %v405 = vsub.f32 %v357, %v389
      %v406 = vsub.f32 %v358, %v389
      %v407 = vmul.f32 %v391, %v391
      %v408 = vmul.f32 %v392, %v392
      %v409 = vmul.f32 %v393, %v393
      %v410 = vmul.f32 %v394, %v394
      %v411 = vmul.f32 %v395, %v395
      %v412 = vmul.f32 %v396, %v396
      %v413 = vmul.f32 %v397, %v397
      %v414 = vmul.f32 %v398, %v398
      %v415 = vmul.f32 %v399, %v399
      %v416 = vmul.f32 %v400, %v400
      %v417 = vmul.f32 %v401, %v401
      %v418 = vmul.f32 %v402, %v402
      %v419 = vmul.f32 %v403, %v403
      %v420 = vmul.f32 %v404, %v404
      %v421 = vmul.f32 %v405, %v405
      %v422 = vmul.f32 %v406, %v406
      %v423 = vadd.f32 %v337, %v407
      %v424 = vadd.f32 %v338, %v408
      %v425 = vadd.f32 %v339, %v409
      %v426 = vadd.f32 %v340, %v410
      %v427 = vadd.f32 %v341, %v411
      %v428 = vadd.f32 %v342, %v412
      %v429 = vadd.f32 %v343, %v413
      %v430 = vadd.f32 %v344, %v414
      %v431 = vadd.f32 %v345, %v415
      %v432 = vadd.f32 %v346, %v416
      %v433 = vadd.f32 %v347, %v417
      %v434 = vadd.f32 %v348, %v418
      %v435 = vadd.f32 %v349, %v419
      %v436 = vadd.f32 %v350, %v420
      %v437 = vadd.f32 %v351, %v421
      %v438 = vadd.f32 %v352, %v422
      %v439 = vperm.slane %v171, 3
      %v440 = vperm.slane %v171, 7
      %v443 = vperm.slane %v439, 3
      %v444 = vperm.slane %v440, 3
      %445 = vset.pattern.permute.xlu0 3
      %446 = vperm.xlu0 %445, %v172
      %v447 = vpop.permute.xlu0 %446
      %449 = vset.pattern.permute.xlu0 3
      %450 = vperm.xlu0 %449, %v173
      %v451 = vpop.permute.xlu0 %450
      %453 = vset.pattern.permute.xlu0 3
      %454 = vperm.xlu0 %453, %v174
      %v455 = vpop.permute.xlu0 %454
      %457 = vset.pattern.permute.xlu0 3
      %458 = vperm.xlu0 %457, %v175
      %v459 = vpop.permute.xlu0 %458
      %461 = vset.pattern.permute.xlu0 3
      %462 = vperm.xlu0 %461, %v176
      %v463 = vpop.permute.xlu0 %462
      %465 = vset.pattern.permute.xlu0 3
      %466 = vperm.xlu0 %465, %v177
      %v467 = vpop.permute.xlu0 %466
      %469 = vset.pattern.permute.xlu0 3
      %470 = vperm.xlu0 %469, %v178
      %v471 = vpop.permute.xlu0 %470
      %473 = vset.pattern.permute.xlu0 3
      %474 = vperm.xlu0 %473, %v179
      %v475 = vpop.permute.xlu0 %474
      %v477 = vsub.f32 %v443, %v447
      %v478 = vsub.f32 %v444, %v447
      %v479 = vsub.f32 %v443, %v451
      %v480 = vsub.f32 %v444, %v451
      %v481 = vsub.f32 %v443, %v455
      %v482 = vsub.f32 %v444, %v455
      %v483 = vsub.f32 %v443, %v459
      %v484 = vsub.f32 %v444, %v459
      %v485 = vsub.f32 %v443, %v463
      %v486 = vsub.f32 %v444, %v463
      %v487 = vsub.f32 %v443, %v467
      %v488 = vsub.f32 %v444, %v467
      %v489 = vsub.f32 %v443, %v471
      %v490 = vsub.f32 %v444, %v471
      %v491 = vsub.f32 %v443, %v475
      %v492 = vsub.f32 %v444, %v475
      %v493 = vmul.f32 %v477, %v477
      %v494 = vmul.f32 %v478, %v478
      %v495 = vmul.f32 %v479, %v479
      %v496 = vmul.f32 %v480, %v480
      %v497 = vmul.f32 %v481, %v481
      %v498 = vmul.f32 %v482, %v482
      %v499 = vmul.f32 %v483, %v483
      %v500 = vmul.f32 %v484, %v484
      %v501 = vmul.f32 %v485, %v485
      %v502 = vmul.f32 %v486, %v486
      %v503 = vmul.f32 %v487, %v487
      %v504 = vmul.f32 %v488, %v488
      %v505 = vmul.f32 %v489, %v489
      %v506 = vmul.f32 %v490, %v490
      %v507 = vmul.f32 %v491, %v491
      %v508 = vmul.f32 %v492, %v492
      %v509 = vadd.f32 %v423, %v493
      %v510 = vadd.f32 %v424, %v494
      %v511 = vadd.f32 %v425, %v495
      %v512 = vadd.f32 %v426, %v496
      %v513 = vadd.f32 %v427, %v497
      %v514 = vadd.f32 %v428, %v498
      %v515 = vadd.f32 %v429, %v499
      %v516 = vadd.f32 %v430, %v500
      %v517 = vadd.f32 %v431, %v501
      %v518 = vadd.f32 %v432, %v502
      %v519 = vadd.f32 %v433, %v503
      %v520 = vadd.f32 %v434, %v504
      %v521 = vadd.f32 %v435, %v505
      %v522 = vadd.f32 %v436, %v506
      %v523 = vadd.f32 %v437, %v507
      %v524 = vadd.f32 %v438, %v508
      %526 = vset.pattern.permute.xlu0 0
      %527 = vperm.xlu0 %526, %v180
      %v528 = vpop.permute.xlu0 %527
      %531 = vset.pattern.permute.xlu0 0
      %532 = vperm.xlu0 %531, %v181
      %v533 = vpop.permute.xlu0 %532
      %536 = vset.pattern.permute.xlu0 0
      %537 = vperm.xlu0 %536, %v182
      %v538 = vpop.permute.xlu0 %537
      %541 = vset.pattern.permute.xlu0 0
      %542 = vperm.xlu0 %541, %v183
      %v543 = vpop.permute.xlu0 %542
      %546 = vset.pattern.permute.xlu0 0
      %547 = vperm.xlu0 %546, %v184
      %v548 = vpop.permute.xlu0 %547
      %551 = vset.pattern.permute.xlu0 0
      %552 = vperm.xlu0 %551, %v185
      %v553 = vpop.permute.xlu0 %552
      %556 = vset.pattern.permute.xlu0 0
      %557 = vperm.xlu0 %556, %v186
      %v558 = vpop.permute.xlu0 %557
      %561 = vset.pattern.permute.xlu0 0
      %562 = vperm.xlu0 %561, %v187
      %v563 = vpop.permute.xlu0 %562
      %v565 = vmul.f32 %v528, %v509
      %v566 = vmul.f32 %v528, %v510
      %v567 = vmul.f32 %v533, %v511
      %v568 = vmul.f32 %v533, %v512
      %v569 = vmul.f32 %v538, %v513
      %v570 = vmul.f32 %v538, %v514
      %v571 = vmul.f32 %v543, %v515
      %v572 = vmul.f32 %v543, %v516
      %v573 = vmul.f32 %v548, %v517
      %v574 = vmul.f32 %v548, %v518
      %v575 = vmul.f32 %v553, %v519
      %v576 = vmul.f32 %v553, %v520
      %v577 = vmul.f32 %v558, %v521
      %v578 = vmul.f32 %v558, %v522
      %v579 = vmul.f32 %v563, %v523
      %v580 = vmul.f32 %v563, %v524
      %v581 = vmax.f32 %v565, %v569
      %v582 = vmax.f32 %v567, %v571
      %v583 = vmax.f32 %v581, %v573
      %v584 = vmax.f32 %v582, %v575
      %v585 = vmax.f32 %v583, %v577
      %v586 = vmax.f32 %v584, %v579
      %v587 = vmax.f32 %v585, %v586
      %v588 = vrot.slane %v587, 4
      %v589 = vmax.f32 %v587, %v588
      %v590 = vrot.slane %v589, 2
      %v591 = vmax.f32 %v589, %v590
      %v592 = vrot.slane %v591, 1
      %v593 = vmax.f32 %v591, %v592
      %v594 = vmax.f32 %v566, %v570
      %v595 = vmax.f32 %v568, %v572
      %v596 = vmax.f32 %v594, %v574
      %v597 = vmax.f32 %v595, %v576
      %v598 = vmax.f32 %v596, %v578
      %v599 = vmax.f32 %v597, %v580
      %v600 = vmax.f32 %v598, %v599
      %v601 = vrot.slane %v600, 4
      %v602 = vmax.f32 %v600, %v601
      %v603 = vrot.slane %v602, 2
      %v604 = vmax.f32 %v602, %v603
      %v605 = vrot.slane %v604, 1
      %v606 = vmax.f32 %v604, %v605
      %v607 = vsub.f32 %v565, %v593
      %v608 = vsub.f32 %v566, %v606
      %v609 = vsub.f32 %v567, %v593
      %v610 = vsub.f32 %v568, %v606
      %v611 = vsub.f32 %v569, %v593
      %v612 = vsub.f32 %v570, %v606
      %v613 = vsub.f32 %v571, %v593
      %v614 = vsub.f32 %v572, %v606
      %v615 = vsub.f32 %v573, %v593
      %v616 = vsub.f32 %v574, %v606
      %v617 = vsub.f32 %v575, %v593
      %v618 = vsub.f32 %v576, %v606
      %v619 = vsub.f32 %v577, %v593
      %v620 = vsub.f32 %v578, %v606
      %v621 = vsub.f32 %v579, %v593
      %v622 = vsub.f32 %v580, %v606
      %v623 = vmul.f32 %v607, 1.442695
      %v624 = vpow.pop %v623
      %v625 = vmul.f32 %v608, 1.442695
      %v626 = vpow.pop %v625
      %v627 = vmul.f32 %v609, 1.442695
      %v628 = vpow.pop %v627
      %v629 = vmul.f32 %v610, 1.442695
      %v630 = vpow.pop %v629
      %v631 = vmul.f32 %v611, 1.442695
      %v632 = vpow.pop %v631
      %v633 = vmul.f32 %v612, 1.442695
      %v634 = vpow.pop %v633
      %v635 = vmul.f32 %v613, 1.442695
      %v636 = vpow.pop %v635
      %v637 = vmul.f32 %v614, 1.442695
      %v638 = vpow.pop %v637
      %v639 = vmul.f32 %v615, 1.442695
      %v640 = vpow.pop %v639
      %v641 = vmul.f32 %v616, 1.442695
      %v642 = vpow.pop %v641
      %v643 = vmul.f32 %v617, 1.442695
      %v644 = vpow.pop %v643
      %v645 = vmul.f32 %v618, 1.442695
      %v646 = vpow.pop %v645
      %v647 = vmul.f32 %v619, 1.442695
      %v648 = vpow.pop %v647
      %v649 = vmul.f32 %v620, 1.442695
      %v650 = vpow.pop %v649
      %v651 = vmul.f32 %v621, 1.442695
      %v652 = vpow.pop %v651
      %v653 = vmul.f32 %v622, 1.442695
      %v654 = vpow.pop %v653
      %v655 = vadd.f32 %v624, %v628
      %v656 = vadd.f32 %v655, %v632
      %v657 = vadd.f32 %v656, %v636
      %v658 = vadd.f32 %v657, %v640
      %v659 = vadd.f32 %v658, %v644
      %v660 = vadd.f32 %v659, %v648
      %v661 = vadd.f32 %v660, %v652
      %v662 = vrot.slane %v661, 4
      %v663 = vadd.f32 %v661, %v662
      %v664 = vrot.slane %v663, 2
      %v665 = vadd.f32 %v663, %v664
      %v666 = vrot.slane %v665, 1
      %v667 = vadd.f32 %v665, %v666
      %v668 = vadd.f32 %v626, %v630
      %v669 = vadd.f32 %v668, %v634
      %v670 = vadd.f32 %v669, %v638
      %v671 = vadd.f32 %v670, %v642
      %v672 = vadd.f32 %v671, %v646
      %v673 = vadd.f32 %v672, %v650
      %v674 = vadd.f32 %v673, %v654
      %v675 = vrot.slane %v674, 4
      %v676 = vadd.f32 %v674, %v675
      %v677 = vrot.slane %v676, 2
      %v678 = vadd.f32 %v676, %v677
      %v679 = vrot.slane %v678, 1
      %v680 = vadd.f32 %v678, %v679
      %v681 = vrcp.pop %v667
      %v682 = vmul.f32 %v667, %v681
      %v683 = vsub.f32 1.0, %v682
      %v684 = vmul.f32 %v681, %v683
      %v685 = vadd.f32 %v681, %v684
      %vm686 = vweird.f32 %v667
      %vm687 = vweird.f32 %v681
      %vm688 = vmor %vm686, %vm687
      %v689 = vsel %vm688, %v681, %v685
      %v690 = vand.u32 2147483647, %v667
      %vm691 = vcmp.eq.f32.partialorder %v690, 8.507059e+37
      %v692 = vand.u32 %v667, 2147483648
      %v693 = vor.u32 1.1754944e-38, %v692
      %v694 = vsel %vm691, %v693, %v689
      %v695 = vmul.f32 %v624, %v694
      %v696 = vrcp.pop %v680
      %v697 = vmul.f32 %v680, %v696
      %v698 = vsub.f32 1.0, %v697
      %v699 = vmul.f32 %v696, %v698
      %v700 = vadd.f32 %v696, %v699
      %vm701 = vweird.f32 %v680
      %vm702 = vweird.f32 %v696
      %vm703 = vmor %vm701, %vm702
      %v704 = vsel %vm703, %v696, %v700
      %v705 = vand.u32 2147483647, %v680
      %vm706 = vcmp.eq.f32.partialorder %v705, 8.507059e+37
      %v707 = vand.u32 %v680, 2147483648
      %v708 = vor.u32 1.1754944e-38, %v707
      %v709 = vsel %vm706, %v708, %v704
      %v710 = vmul.f32 %v626, %v709
      %v711 = vmul.f32 %v628, %v694
      %v712 = vmul.f32 %v630, %v709
      %v713 = vmul.f32 %v632, %v694
      %v714 = vmul.f32 %v634, %v709
      %v715 = vmul.f32 %v636, %v694
      %v716 = vmul.f32 %v638, %v709
      %v717 = vmul.f32 %v640, %v694
      %v718 = vmul.f32 %v642, %v709
      %v719 = vmul.f32 %v644, %v694
      %v720 = vmul.f32 %v646, %v709
      %v721 = vmul.f32 %v648, %v694
      %v722 = vmul.f32 %v650, %v709
      %v723 = vmul.f32 %v652, %v694
      %v724 = vmul.f32 %v654, %v709
      %725 = vst [vmem:[#allocation1] ss:$2 sm:$0xff] %v171
      %v726 = vld.sshfl [vmem:[#allocation1] sm:$0xff pattern:$0x75316420]
      %v727 = vld.sshfl [vmem:[#allocation1 + $0x8] sm:$0xff pattern:$0x75316420]
      %730 = vmatpush.xpose.msra.mxu0 0.0
      %731 = vmatpush.xpose.msra.mxu0 0.0
      %732 = vmatpush.xpose.msra.mxu0 0.0
      %733 = vmatpush.xpose.msra.mxu0 0.0
      %734 = vmatpush.xpose.msra.mxu0 0.0
      %735 = vmatpush.xpose.msra.mxu0 0.0
      %736 = vmatpush.xpose.msra.mxu0 0.0
      %737 = vmatpush.xpose.msra.mxu0 0.0
      %738 = vmatpush.xpose.msra.mxu0 0.0
      %739 = vmatpush.xpose.msra.mxu0 0.0
      %740 = vmatpush.xpose.msra.mxu0 0.0
      %741 = vmatpush.xpose.msra.mxu0 0.0
      %742 = vmatpush.xpose.msra.mxu0 0.0
      %743 = vmatpush.xpose.msra.mxu0 0.0
      %744 = vmatpush.xpose.msra.mxu0 0.0
      %745 = vmatpush.xpose.msra.mxu0 %v726
      %746 = vmatmul.f32.gmra.mxu0 %v695
      %v747 = vpop.f32.mrf.mxu0
      %v748 = vadd.f32 0.0, %v747
      %749 = vmatmul.f32.gmra.mxu0 %v711
      %v750 = vpop.f32.mrf.mxu0
      %v751 = vadd.f32 0.0, %v750
      %752 = vmatmul.f32.gmra.mxu0 %v713
      %v753 = vpop.f32.mrf.mxu0
      %v754 = vadd.f32 0.0, %v753
      %755 = vmatmul.f32.gmra.mxu0 %v715
      %v756 = vpop.f32.mrf.mxu0
      %v757 = vadd.f32 0.0, %v756
      %758 = vmatmul.f32.gmra.mxu0 %v717
      %v759 = vpop.f32.mrf.mxu0
      %v760 = vadd.f32 0.0, %v759
      %761 = vmatmul.f32.gmra.mxu0 %v719
      %v762 = vpop.f32.mrf.mxu0
      %v763 = vadd.f32 0.0, %v762
      %764 = vmatmul.f32.gmra.mxu0 %v721
      %v765 = vpop.f32.mrf.mxu0
      %v766 = vadd.f32 0.0, %v765
      %767 = vmatmul.f32.gmra.mxu0 %v723
      %v768 = vpop.f32.mrf.mxu0
      %v769 = vadd.f32 0.0, %v768
      %770 = vdwg.mxu0
      %771 = vmatpush.xpose.msra.mxu0 0.0
      %772 = vmatpush.xpose.msra.mxu0 0.0
      %773 = vmatpush.xpose.msra.mxu0 0.0
      %774 = vmatpush.xpose.msra.mxu0 0.0
      %775 = vmatpush.xpose.msra.mxu0 0.0
      %776 = vmatpush.xpose.msra.mxu0 0.0
      %777 = vmatpush.xpose.msra.mxu0 0.0
      %778 = vmatpush.xpose.msra.mxu0 0.0
      %779 = vmatpush.xpose.msra.mxu0 0.0
      %780 = vmatpush.xpose.msra.mxu0 0.0
      %781 = vmatpush.xpose.msra.mxu0 0.0
      %782 = vmatpush.xpose.msra.mxu0 0.0
      %783 = vmatpush.xpose.msra.mxu0 0.0
      %784 = vmatpush.xpose.msra.mxu0 0.0
      %785 = vmatpush.xpose.msra.mxu0 0.0
      %786 = vmatpush.xpose.msra.mxu0 %v727
      %787 = vmatmul.f32.gmra.mxu0 %v710
      %v788 = vpop.f32.mrf.mxu0
      %v789 = vadd.f32 %v748, %v788
      %790 = vmatmul.f32.gmra.mxu0 %v712
      %v791 = vpop.f32.mrf.mxu0
      %v792 = vadd.f32 %v751, %v791
      %793 = vmatmul.f32.gmra.mxu0 %v714
      %v794 = vpop.f32.mrf.mxu0
      %v795 = vadd.f32 %v754, %v794
      %796 = vmatmul.f32.gmra.mxu0 %v716
      %v797 = vpop.f32.mrf.mxu0
      %v798 = vadd.f32 %v757, %v797
      %799 = vmatmul.f32.gmra.mxu0 %v718
      %v800 = vpop.f32.mrf.mxu0
      %v801 = vadd.f32 %v760, %v800
      %802 = vmatmul.f32.gmra.mxu0 %v720
      %v803 = vpop.f32.mrf.mxu0
      %v804 = vadd.f32 %v763, %v803
      %805 = vmatmul.f32.gmra.mxu0 %v722
      %v806 = vpop.f32.mrf.mxu0
      %v807 = vadd.f32 %v766, %v806
      %808 = vmatmul.f32.gmra.mxu0 %v724
      %v809 = vpop.f32.mrf.mxu0
      %v810 = vadd.f32 %v769, %v809
      %811 = vdwg.mxu0
      %v812 = vadd.f32 %v695, %v710
      %813 = vadd.xlane.f32.xlu0 %v812
      %v814 = vpop.xlane.xlu0 %813
      %v815 = vadd.f32 %v711, %v712
      %816 = vadd.xlane.f32.xlu0 %v815
      %v817 = vpop.xlane.xlu0 %816
      %v818 = vadd.f32 %v713, %v714
      %819 = vadd.xlane.f32.xlu0 %v818
      %v820 = vpop.xlane.xlu0 %819
      %v821 = vadd.f32 %v715, %v716
      %822 = vadd.xlane.f32.xlu0 %v821
      %v823 = vpop.xlane.xlu0 %822
      %v824 = vadd.f32 %v717, %v718
      %825 = vadd.xlane.f32.xlu0 %v824
      %v826 = vpop.xlane.xlu0 %825
      %v827 = vadd.f32 %v719, %v720
      %828 = vadd.xlane.f32.xlu0 %v827
      %v829 = vpop.xlane.xlu0 %828
      %v830 = vadd.f32 %v721, %v722
      %831 = vadd.xlane.f32.xlu0 %v830
      %v832 = vpop.xlane.xlu0 %831
      %v833 = vadd.f32 %v723, %v724
      %834 = vadd.xlane.f32.xlu0 %v833
      %v835 = vpop.xlane.xlu0 %834
      %v836 = vmul.f32 %v814, %v172
      %v837 = vmul.f32 %v817, %v173
      %v838 = vmul.f32 %v820, %v174
      %v839 = vmul.f32 %v823, %v175
      %v840 = vmul.f32 %v826, %v176
      %v841 = vmul.f32 %v829, %v177
      %v842 = vmul.f32 %v832, %v178
      %v843 = vmul.f32 %v835, %v179
      %v844 = vsub.f32 %v789, %v836
      %v845 = vsub.f32 %v792, %v837
      %v846 = vsub.f32 %v795, %v838
      %v847 = vsub.f32 %v798, %v839
      %v848 = vsub.f32 %v801, %v840
      %v849 = vsub.f32 %v804, %v841
      %v850 = vsub.f32 %v807, %v842
      %v851 = vsub.f32 %v810, %v843
      %vm852 = vcmask 31744
      %853 = vst.msk [vmem:[%s170] sm:$0xff] %vm852, %v844
      %854 = vst.msk [vmem:[%s170 + $0x8] sm:$0xff] %vm852, %v845
      %855 = vst.msk [vmem:[%s170 + $0x10] sm:$0xff] %vm852, %v846
      %856 = vst.msk [vmem:[%s170 + $0x18] sm:$0xff] %vm852, %v847
      %857 = vst.msk [vmem:[%s170 + $0x20] sm:$0xff] %vm852, %v848
      %858 = vst.msk [vmem:[%s170 + $0x28] sm:$0xff] %vm852, %v849
      %859 = vst.msk [vmem:[%s170 + $0x30] sm:$0xff] %vm852, %v850
      %860 = vst.msk [vmem:[%s170 + $0x38] sm:$0xff] %vm852, %v851
      %p861 = scmp.lt.s32.totalorder %s14, 1
      %s862 = scalar_select %p861, %s14, 1
      %s863 = smul.addr %s862, 8
      %s864 = smul.addr %s863, 8
      %s865 = scalar_lea.vmem %s3, %s864
      // Predicated region
      $region33: #{encoding_forward.1} parent=31 // pred_check
        %p866 = pneg %p100
      $region34: #{encoding_forward.1} parent=31 // pred_check_branch
        %868 = sbr.rel (%p866) target = $region36
      $region35: #{encoding_forward.1} parent=31 // pred_region
        _
      $region36: #{encoding_forward.1} parent=31 // pred_fallthru
        _
    $region32: #{encoding_forward.1} parent=5 // pred_fallthru
      _
    %p869 = scmp.le.s32.totalorder 2, %s9
    // Predicated region
    $region37: #{encoding_forward.1} parent=5 // pred_check
      %p870 = pneg %p869
    $region38: #{encoding_forward.1} parent=5 // pred_check_branch
      %872 = sbr.rel (%p870) target = $region40
    $region39: #{encoding_forward.1} parent=5 // pred_region
      %s873 = ssub.s32 %s9, 2
      // Predicated region
      $region41: #{encoding_forward.1} parent=39 // pred_check
        %p874 = pneg %p106
      $region42: #{encoding_forward.1} parent=39 // pred_check_branch
        %876 = sbr.rel (%p874) target = $region44
      $region43: #{encoding_forward.1} parent=39 // pred_region
        %p877 = scmp.lt.s32.totalorder %s15, 1
        %s878 = scalar_select %p877, %s15, 1
        %s879 = smul.addr %s878, 8
        %s880 = smul.addr %s879, 8
        %s881 = scalar_lea.vmem %s3, %s880
      $region44: #{encoding_forward.1} parent=39 // pred_fallthru
        _
    $region40: #{encoding_forward.1} parent=5 // pred_fallthru
      _
  $region6: #{encoding_forward.1} parent=0 // loop_footer
    %s13 = sadd.s32 1, %s9
  $region7: #{encoding_forward.1} parent=0 // loop_footer_branch
    %8 = sbr.rel target = $region3
  $region8: #{encoding_forward.1} parent=0 // loop_exit
    _

</llo_original>
